<compile_context>
chip_gen: v7x
topology: tpu7x:2x2x1
jax: 0.10.0
libtpu: 0.0.40
codegen_flags: <defaults>
</compile_context>

<pallas_src>
import functools

import numpy as np
import jax
import jax.numpy as jnp
from jax.experimental import pallas as pl
from jax.experimental.pallas import tpu as pltpu


def _round_up(x, m):
    return ((x + m - 1) // m) * m


def _ei_dense_matmul_kernel(x_ref, w_ref, b_ref, out_ref, acc_ref):
    """One (tm, tn) output tile; K-reduction on grid axis 2 with an f32 accumulator.
    Bias add is fused into the final writeback."""
    k = pl.program_id(2)

    @pl.when(k == 0)
    def _():
        acc_ref[...] = jnp.zeros_like(acc_ref)

    acc_ref[...] += jnp.dot(x_ref[...], w_ref[...],
                            preferred_element_type=jnp.float32)

    @pl.when(k == pl.num_programs(2) - 1)
    def _():
        # b_ref is (1, tn) and broadcasts over the tm rows of the accumulator.
        out_ref[...] = (acc_ref[...] + b_ref[...]).astype(out_ref.dtype)


def fold_and_pad_params(Wex, Wix, Wei, bias, *, compute_dtype=jnp.bfloat16,
                        max_tn=512, max_tk=512):
    """Hoisted out of the hot path (call once for static weights):
      - fold W = Wex - Wei @ Wix  (the module's `W` property)
      - transpose to (n_input, ne) for a row-major MXU matmul
      - zero-pad K and N to lane-aligned tile multiples
      - cast weights to the MXU compute dtype (bf16 by default)
    Returns (w_t_padded, bias_row_padded, ne, tn, tk)."""
    Wex = jnp.asarray(Wex, jnp.float32)
    Wix = jnp.asarray(Wix, jnp.float32)
    Wei = jnp.asarray(Wei, jnp.float32)
    bias = jnp.asarray(bias, jnp.float32)

    ne, n_input = Wex.shape
    if Wix.shape[0] > 0:
        w_comb = Wex - Wei @ Wix          # (ne, n_input); O(ne*ni*n_input), ni = 0.1*ne
    else:
        w_comb = Wex                      # guard: int(ne*0.1) == 0 for ne < 10

    tn = min(max_tn, _round_up(ne, 128))
    tk = min(max_tk, _round_up(n_input, 128))
    n_pad = _round_up(ne, tn)
    k_pad = _round_up(n_input, tk)

    w_t = jnp.zeros((k_pad, n_pad), jnp.float32).at[:n_input, :ne].set(w_comb.T)
    w_t = w_t.astype(compute_dtype)       # bf16 operands, f32 accumulation in-kernel
    b_row = jnp.zeros((1, n_pad), jnp.float32).at[:, :ne].set(bias.T)
    return w_t, b_row, ne, tn, tk


@functools.partial(jax.jit,
                   static_argnames=("ne", "tn", "tk", "compute_dtype", "max_tm"))
def ei_dense_forward_prepared(x, w_t, b_row, *, ne, tn, tk,
                              compute_dtype=jnp.bfloat16, max_tm=256):
    """x: (B, n_input) f32; w_t: (K_pad, N_pad) compute_dtype; b_row: (1, N_pad) f32."""
    B, n_input = x.shape
    k_pad, n_pad = w_t.shape

    tm = min(max_tm, _round_up(B, 8))          # sublane-aligned batch tile
    m_pad = _round_up(B, tm)

    x_p = (jnp.zeros((m_pad, k_pad), jnp.float32)
           .at[:B, :n_input].set(jnp.asarray(x, jnp.float32))
           .astype(compute_dtype))

    grid = (m_pad // tm, n_pad // tn, k_pad // tk)

    out_padded = pl.pallas_call(
        _ei_dense_matmul_kernel,
        out_shape=jax.ShapeDtypeStruct((m_pad, n_pad), jnp.float32),
        grid_spec=pltpu.PrefetchScalarGridSpec(
            num_scalar_prefetch=0,
            grid=grid,
            in_specs=[
                pl.BlockSpec((tm, tk), lambda i, j, k: (i, k)),   # x tile
                pl.BlockSpec((tk, tn), lambda i, j, k: (k, j)),   # folded weight tile
                pl.BlockSpec((1, tn), lambda i, j, k: (0, j)),    # bias row
            ],
            out_specs=pl.BlockSpec((tm, tn), lambda i, j, k: (i, j)),
            scratch_shapes=[pltpu.VMEM((tm, tn), jnp.float32)],   # f32 accumulator
        ),
        compiler_params=pltpu.CompilerParams(
            # M / N parallel (megacore sharding on v7x, harmless on v5e/v6e),
            # K is the sequential reduction axis.
            dimension_semantics=("parallel", "parallel", "arbitrary"),
            vmem_limit_bytes=32 * 1024 * 1024,
        ),
    )(x_p, w_t, b_row)

    return out_padded[:B, :ne]


def ei_dense_forward(x, Wex, Wix, Wei, bias, *, compute_dtype=jnp.bfloat16):
    """Convenience wrapper (folds + pads weights each call; for static weights prefer
    calling fold_and_pad_params once and reusing ei_dense_forward_prepared)."""
    w_t, b_row, ne, tn, tk = fold_and_pad_params(
        Wex, Wix, Wei, bias, compute_dtype=compute_dtype)
    return ei_dense_forward_prepared(x, w_t, b_row, ne=ne, tn=tn, tk=tk,
                                     compute_dtype=compute_dtype)


def init_weights(n_input, ne, ni, numerator=2, k=1, seed=0):
    """Deterministic replica of EiDenseLayerMeanHomeostatic.init_weights (lognormal)."""
    rng = np.random.default_rng(seed)
    target_std_wex = np.sqrt(numerator * ne / (n_input * (ne - 1)))

    def calc_ln_mu_sigma(mean, var):
        mu_ln = np.log(mean ** 2 / np.sqrt(mean ** 2 + var))
        sigma_ln = np.sqrt(np.log(1 + var / mean ** 2))
        return mu_ln, sigma_ln

    mu, sigma = calc_ln_mu_sigma(target_std_wex * k, target_std_wex ** 2)
    Wex = rng.lognormal(mu, sigma, size=(ne, n_input)).astype(np.float32)
    Wei = rng.lognormal(mu, sigma, size=(ne, ni)).astype(np.float32)
    Wei = Wei / Wei.sum(axis=1, keepdims=True)
    Wix = (np.ones((ni, 1)) * Wex.mean(axis=0, keepdims=True)).astype(np.float32)
    bias = np.zeros((ne, 1), dtype=np.float32)   # use_bias=True, split_bias=False
    return Wex, Wix, Wei, bias


if __name__ == "__main__":
    # Small shapes consistent with the module defaults: ni = int(ne * 0.1)
    batch, n_input, ne = 8, 32, 32
    ni = int(ne * 0.1)   # = 3

    Wex, Wix, Wei, bias = init_weights(n_input, ne, ni, seed=0)

    key = jax.random.PRNGKey(0)
    x = jax.random.normal(key, (batch, n_input), dtype=jnp.float32)

    # Hoisted weight preparation (fold + pad + bf16 cast) done once.
    w_t, b_row, ne_out, tn, tk = fold_and_pad_params(Wex, Wix, Wei, bias)
    out = ei_dense_forward_prepared(x, w_t, b_row, ne=ne_out, tn=tn, tk=tk)
    out = jax.block_until_ready(out)
    out_np = np.asarray(out)

    # 1) Tight check against a matched-precision reference (same folded weight,
    #    same bf16 operand rounding, f32 accumulation).
    W_comb = jnp.asarray(Wex) - jnp.asarray(Wei) @ jnp.asarray(Wix)
    x_bf = x.astype(jnp.bfloat16).astype(jnp.float32)
    w_bf = W_comb.astype(jnp.bfloat16).astype(jnp.float32)
    ref_matched = np.asarray(x_bf @ w_bf.T + jnp.asarray(bias).T)
    np.testing.assert_allclose(out_np, ref_matched, rtol=1e-4, atol=1e-5)

    # 2) Loose check against the original module math (three f32 matmuls);
    #    tolerance reflects bf16 operand rounding only.
    ref_full = np.asarray(x @ Wex.T + bias.T - (x @ Wix.T) @ Wei.T)
    np.testing.assert_allclose(out_np, ref_full, rtol=5e-2, atol=1e-1)

    print("KERNEL_OK")
</pallas_src>

<mosaic_0001>
module attributes {stable_mosaic.version = 11 : i64} {
  func.func @_ei_dense_matmul_kernel(%arg0: i32, %arg1: i32, %arg2: i32, %arg3: memref<8x128xbf16, #tpu.memory_space<vmem>>, %arg4: memref<128x128xbf16, #tpu.memory_space<vmem>>, %arg5: memref<1x128xf32, #tpu.memory_space<vmem>>, %arg6: memref<8x128xf32, #tpu.memory_space<vmem>>, %arg7: memref<8x128xf32, #tpu.memory_space<vmem>>) attributes {dimension_semantics = [#tpu.dimension_semantics<parallel>, #tpu.dimension_semantics<parallel>, #tpu.dimension_semantics<arbitrary>], iteration_bounds = array<i64: 1, 1, 1>, scalar_prefetch = 0 : i64, scratch_operands = 1 : i64, tpu.core_type = #tpu.core_type<tc>, window_params = [{transform_indices = @transform_0, window_bounds = array<i64: 8, 128>}, {transform_indices = @transform_1, window_bounds = array<i64: 128, 128>}, {transform_indices = @transform_2, window_bounds = array<i64: 1, 128>}, {transform_indices = @transform_3, window_bounds = array<i64: 8, 128>}]} {
    %c0_i32 = arith.constant 0 : i32
    %0 = arith.cmpi eq, %arg2, %c0_i32 : i32
    %1 = arith.extui %0 : i1 to i32
    %c0_i32_0 = arith.constant 0 : i32
    %2 = arith.cmpi ne, %1, %c0_i32_0 : i32
    scf.if %2 {
      %cst_10 = arith.constant 0.000000e+00 : f32
      %12 = vector.broadcast %cst_10 : f32 to vector<8x128xf32>
      %c0_11 = arith.constant 0 : index
      %c0_12 = arith.constant 0 : index
      %13 = vector.load %arg7[%c0_11, %c0_12] : memref<8x128xf32, #tpu.memory_space<vmem>>, vector<8x128xf32>
      tpu.vector_store %arg7[%c0_11, %c0_12], %12 {strides = array<i32>} : memref<8x128xf32, #tpu.memory_space<vmem>>, vector<8x128xf32>,
    } else {
    }
    %c0 = arith.constant 0 : index
    %c0_1 = arith.constant 0 : index
    %3 = vector.load %arg7[%c0, %c0_1] : memref<8x128xf32, #tpu.memory_space<vmem>>, vector<8x128xf32>
    %c0_2 = arith.constant 0 : index
    %c0_3 = arith.constant 0 : index
    %4 = vector.load %arg3[%c0_2, %c0_3] : memref<8x128xbf16, #tpu.memory_space<vmem>>, vector<8x128xbf16>
    %c0_4 = arith.constant 0 : index
    %c0_5 = arith.constant 0 : index
    %5 = vector.load %arg4[%c0_4, %c0_5] : memref<128x128xbf16, #tpu.memory_space<vmem>>, vector<128x128xbf16>
    %cst = arith.constant dense<0.000000e+00> : vector<8x128xf32>
    %6 = tpu.matmul %4, %5, %cst {dimension_numbers = #tpu.dot_dimension_numbers<[1], [0], [0], [1], [0, 0, 1, 1], [], []>} : vector<8x128xbf16>, vector<128x128xbf16>, vector<8x128xf32> -> vector<8x128xf32>
    %7 = arith.addf %3, %6 : vector<8x128xf32>
    %c0_6 = arith.constant 0 : index
    %c0_7 = arith.constant 0 : index
    %8 = vector.load %arg7[%c0_6, %c0_7] : memref<8x128xf32, #tpu.memory_space<vmem>>, vector<8x128xf32>
    tpu.vector_store %arg7[%c0_6, %c0_7], %7 {strides = array<i32>} : memref<8x128xf32, #tpu.memory_space<vmem>>, vector<8x128xf32>,
    %c0_i32_8 = arith.constant 0 : i32
    %9 = arith.cmpi eq, %arg2, %c0_i32_8 : i32
    %10 = arith.extui %9 : i1 to i32
    %c0_i32_9 = arith.constant 0 : i32
    %11 = arith.cmpi ne, %10, %c0_i32_9 : i32
    scf.if %11 {
      %c0_10 = arith.constant 0 : index
      %c0_11 = arith.constant 0 : index
      %12 = vector.load %arg7[%c0_10, %c0_11] : memref<8x128xf32, #tpu.memory_space<vmem>>, vector<8x128xf32>
      %c0_12 = arith.constant 0 : index
      %c0_13 = arith.constant 0 : index
      %13 = vector.load %arg5[%c0_12, %c0_13] : memref<1x128xf32, #tpu.memory_space<vmem>>, vector<1x128xf32>
      %14 = vector.broadcast %13 : vector<1x128xf32> to vector<8x128xf32>
      %15 = arith.addf %12, %14 : vector<8x128xf32>
      %c0_14 = arith.constant 0 : index
      %c0_15 = arith.constant 0 : index
      %16 = vector.load %arg6[%c0_14, %c0_15] : memref<8x128xf32, #tpu.memory_space<vmem>>, vector<8x128xf32>
      tpu.vector_store %arg6[%c0_14, %c0_15], %15 {strides = array<i32>} : memref<8x128xf32, #tpu.memory_space<vmem>>, vector<8x128xf32>,
    } else {
    }
    return
  }
  func.func @transform_0(%arg0: i32, %arg1: i32, %arg2: i32) -> (i32, i32) {
    %c0_i32 = arith.constant 0 : i32
    return %arg0, %arg2 : i32, i32
  }
  func.func @transform_1(%arg0: i32, %arg1: i32, %arg2: i32) -> (i32, i32) {
    %c0_i32 = arith.constant 0 : i32
    return %arg2, %arg1 : i32, i32
  }
  func.func @transform_2(%arg0: i32, %arg1: i32, %arg2: i32) -> (i32, i32) {
    %c0_i32 = arith.constant 0 : i32
    %c0_i32_0 = arith.constant 0 : i32
    return %c0_i32, %arg1 : i32, i32
  }
  func.func @transform_3(%arg0: i32, %arg1: i32, %arg2: i32) -> (i32, i32) {
    %c0_i32 = arith.constant 0 : i32
    return %arg0, %arg1 : i32, i32
  }
}

</mosaic_0001>

<llo_original>
// kernel: ei_dense_forward_prepared.1
$region0: #{ei_dense_forward_prepared.1}
  #allocation0 [shape = 'u32[]', space=smem, size = 0x4, offset = 0x4, fixed_abs, tag = 'smem constant byte address 0x4 - core index']
  #allocation1 [shape = 'u32[144,128]{1,0:T(1,128)}', space=vmem, size = 0x12000, scoped, tag = 'internal scratch']
  #allocation2 [shape = 'f32[8,128]{1,0:T(8,128)}', space=vmem, size = 0x1000, scoped, tag = 'scratch operand']
  %s0 = inlined_call_operand.vmem [shape: bf16[8,128], index: 0, kind: input, shape index: {}]
  %s1 = inlined_call_operand.hbm [shape: bf16[128,128], index: 1, kind: input, shape index: {}]
  %s2 = inlined_call_operand.vmem [shape: f32[1,128], index: 2, kind: input, shape index: {}]
  %s3 = inlined_call_operand.hbm [shape: f32[8,128], index: 3, kind: output, shape index: {}]
  %s4 = sld [smem:[#allocation0]]
  $region34: #{ei_dense_forward_prepared.1} parent=0
    _
  %s6 = ssub.s32 1, %s4
  %s7 = scalar_select 0, %s6, %s4
  $region1: #{ei_dense_forward_prepared.1} parent=0
    #allocation3 [shape = 'u8[32768]{0}', space=vmem, size = 0x8000, scoped, tag = 'input window, operand 1, single buffered']
    #allocation4 [shape = 's32[1]{0}', space=sflag, size = 0x4, scoped, tag = 'scoped memory for ei_dense_forward_prepared.1']
    #allocation5 [shape = 's32[1]{0}', space=sflag, size = 0x4, scoped, tag = 'scoped memory for ei_dense_forward_prepared.1']
    #allocation6 [shape = 'u8[4096]{0}', space=vmem, size = 0x1000, scoped, tag = 'output window, operand 0, single buffered']
    %8 = vsyncpa [#allocation4], 0
    %9 = vsyncpa [#allocation5], 0
    // Predicated region
    $region2: #{ei_dense_forward_prepared.1} parent=1 // pred_check
      _
    $region3: #{ei_dense_forward_prepared.1} parent=1 // pred_check_branch
      %11 = sbr.rel (0) target = $region5
    $region4: #{ei_dense_forward_prepared.1} parent=1 // pred_region
      _
    $region5: #{ei_dense_forward_prepared.1} parent=1 // pred_fallthru
      _
    // Predicated region
    $region6: #{ei_dense_forward_prepared.1} parent=1 // pred_check
      _
    $region7: #{ei_dense_forward_prepared.1} parent=1 // pred_check_branch
      %13 = sbr.rel (0) target = $region9
    $region8: #{ei_dense_forward_prepared.1} parent=1 // pred_region
      %s15 = ssub.s32 1024, 1024
      %16 = vsyncadd [#allocation4], %s15
      %s17 = sshll.u32 [#allocation3], 4
      %s18 = int_to_ptr.vmem [resolvable:$true] %s17
      %23 = dma.hbm_to_vmem [thread:$0]  %s1, 1024, %s18, [#allocation4], 64, 64, 4
    $region9: #{ei_dense_forward_prepared.1} parent=1 // pred_fallthru
      _
    // Predicated region
    $region10: #{ei_dense_forward_prepared.1} parent=1 // pred_check
      _
    $region11: #{ei_dense_forward_prepared.1} parent=1 // pred_check_branch
      %25 = sbr.rel (0) target = $region13
    $region12: #{ei_dense_forward_prepared.1} parent=1 // pred_region
      _
    $region13: #{ei_dense_forward_prepared.1} parent=1 // pred_fallthru
      _
    // Predicated region
    $region14: #{ei_dense_forward_prepared.1} parent=1 // pred_check
      _
    $region15: #{ei_dense_forward_prepared.1} parent=1 // pred_check_branch
      %27 = sbr.rel (0) target = $region17
    $region16: #{ei_dense_forward_prepared.1} parent=1 // pred_region
      %28 = dma.done [#allocation4], 1024
    $region17: #{ei_dense_forward_prepared.1} parent=1 // pred_fallthru
      _
    %p30 = scmp.eq.s32.totalorder 0, 0
    // Predicated region
    $region18: #{ei_dense_forward_prepared.1} parent=1 // pred_check
      %p31 = pneg %p30
    $region19: #{ei_dense_forward_prepared.1} parent=1 // pred_check_branch
      %33 = sbr.rel (%p31) target = $region21
    $region20: #{ei_dense_forward_prepared.1} parent=1 // pred_region
      %34 = vst [vmem:[#allocation2] sm:$0xff] 0.0
    $region21: #{ei_dense_forward_prepared.1} parent=1 // pred_fallthru
      _
    %v35 = vld [vmem:[#allocation2] sm:$0xff]
    %v36 = vld [vmem:[%s0] sm:$0xf]
    %v37 = vld [vmem:[#allocation3] sm:$0xf]
    %v38 = vld [vmem:[#allocation3 + $0x4] sm:$0xf]
    %v39 = vld [vmem:[#allocation3 + $0x8] sm:$0xf]
    %v40 = vld [vmem:[#allocation3 + $0xc] sm:$0xf]
    %v41 = vld [vmem:[#allocation3 + $0x10] sm:$0xf]
    %v42 = vld [vmem:[#allocation3 + $0x14] sm:$0xf]
    %v43 = vld [vmem:[#allocation3 + $0x18] sm:$0xf]
    %v44 = vld [vmem:[#allocation3 + $0x1c] sm:$0xf]
    %v45 = vld [vmem:[#allocation3 + $0x20] sm:$0xf]
    %v46 = vld [vmem:[#allocation3 + $0x24] sm:$0xf]
    %v47 = vld [vmem:[#allocation3 + $0x28] sm:$0xf]
    %v48 = vld [vmem:[#allocation3 + $0x2c] sm:$0xf]
    %v49 = vld [vmem:[#allocation3 + $0x30] sm:$0xf]
    %v50 = vld [vmem:[#allocation3 + $0x34] sm:$0xf]
    %v51 = vld [vmem:[#allocation3 + $0x38] sm:$0xf]
    %v52 = vld [vmem:[#allocation3 + $0x3c] sm:$0xf]
    %v69 = vunpack.c.l.b16 %v37
    %v70 = vunpack.c.l.b16 %v38
    %v71 = vunpack.c.l.b16 %v39
    %v72 = vunpack.c.l.b16 %v40
    %v73 = vunpack.c.l.b16 %v41
    %v74 = vunpack.c.l.b16 %v42
    %v75 = vunpack.c.l.b16 %v43
    %v76 = vunpack.c.l.b16 %v44
    %v77 = vunpack.c.l.b16 %v45
    %v78 = vunpack.c.l.b16 %v46
    %v79 = vunpack.c.l.b16 %v47
    %v80 = vunpack.c.l.b16 %v48
    %v81 = vunpack.c.l.b16 %v49
    %v82 = vunpack.c.l.b16 %v50
    %v83 = vunpack.c.l.b16 %v51
    %v84 = vunpack.c.l.b16 %v52
    %v85 = vpack.c.b16 %v70, %v69
    %v86 = vpack.c.b16 %v72, %v71
    %v87 = vpack.c.b16 %v74, %v73
    %v88 = vpack.c.b16 %v76, %v75
    %v89 = vpack.c.b16 %v78, %v77
    %v90 = vpack.c.b16 %v80, %v79
    %v91 = vpack.c.b16 %v82, %v81
    %v92 = vpack.c.b16 %v84, %v83
    %101 = vmatprep.subr.bf16.mxu0 0
    %102 = vmatpush1.bf16.msra.mxu0 %v85
    %103 = vmatprep.subr.bf16.mxu0 0
    %104 = vmatpush1.bf16.msra.mxu0 %v86
    %105 = vmatprep.subr.bf16.mxu0 0
    %106 = vmatpush1.bf16.msra.mxu0 %v87
    %107 = vmatprep.subr.bf16.mxu0 0
    %108 = vmatpush1.bf16.msra.mxu0 %v88
    %109 = vmatprep.subr.bf16.mxu0 0
    %110 = vmatpush1.bf16.msra.mxu0 %v89
    %111 = vmatprep.subr.bf16.mxu0 0
    %112 = vmatpush1.bf16.msra.mxu0 %v90
    %113 = vmatprep.subr.bf16.mxu0 0
    %114 = vmatpush1.bf16.msra.mxu0 %v91
    %115 = vmatprep.subr.bf16.mxu0 0
    %116 = vmatpush1.bf16.msra.mxu0 %v92
    %117 = vmatprep.subr.bf16.mxu0 0
    %118 = vmatpush1.bf16.msra.mxu0 0
    %119 = vmatprep.subr.bf16.mxu0 0
    %120 = vmatpush1.bf16.msra.mxu0 0
    %121 = vmatprep.subr.bf16.mxu0 0
    %122 = vmatpush1.bf16.msra.mxu0 0
    %123 = vmatprep.subr.bf16.mxu0 0
    %124 = vmatpush1.bf16.msra.mxu0 0
    %125 = vmatprep.subr.bf16.mxu0 0
    %126 = vmatpush1.bf16.msra.mxu0 0
    %127 = vmatprep.subr.bf16.mxu0 0
    %128 = vmatpush1.bf16.msra.mxu0 0
    %129 = vmatprep.subr.bf16.mxu0 0
    %130 = vmatpush1.bf16.msra.mxu0 0
    %131 = vmatprep.subr.bf16.mxu0 0
    %132 = vmatpush1.bf16.msra.mxu0 0
    %133 = vmatprep.mubr.bf16.mxu0 0
    %134 = vmatmul.mubr.bf16.gmra.mrb[0].mxu0 %v36
    %v135 = vpop.f32.mrb[0].mxu0
    %v136 = vadd.f32 0.0, %v135
    %v137 = vpop.f32.mrb[0].mxu0
    %v138 = vpop.f32.mrb[0].mxu0
    %v139 = vpop.f32.mrb[0].mxu0
    %140 = vdwg.mxu0
    %v141 = vadd.f32 %v35, %v136
    %142 = vst [vmem:[#allocation2] sm:$0xff] %v141
    // Predicated region
    $region22: #{ei_dense_forward_prepared.1} parent=1 // pred_check
      %p143 = pneg %p30
    $region23: #{ei_dense_forward_prepared.1} parent=1 // pred_check_branch
      %145 = sbr.rel (%p143) target = $region25
    $region24: #{ei_dense_forward_prepared.1} parent=1 // pred_region
      %v146 = vld [vmem:[#allocation2] sm:$0xff]
      %v147 = vld [vmem:[%s2] sm:$0x1]
      %v149 = vlaneseq
      %v150 = vshrl.u32 %v149, 7
      %v151 = vsub.s32 0, %v150
      %v152 = vrot.slane %v147, %v151
      %v154 = vadd.f32 %v146, %v152
      %155 = vst [vmem:[#allocation6] sm:$0xff] %v154
    $region25: #{ei_dense_forward_prepared.1} parent=1 // pred_fallthru
      _
    // Predicated region
    $region26: #{ei_dense_forward_prepared.1} parent=1 // pred_check
      _
    $region27: #{ei_dense_forward_prepared.1} parent=1 // pred_check_branch
      %157 = sbr.rel (0) target = $region29
    $region28: #{ei_dense_forward_prepared.1} parent=1 // pred_region
      %s159 = ssub.s32 128, 128
      %160 = vsyncadd [#allocation5], %s159
      %s162 = sshll.u32 [#allocation6], 4
      %s163 = int_to_ptr.vmem [resolvable:$true] %s162
      %165 = dma.vmem_to_hbm [thread:$0]  %s163, 128, %s3, [#allocation5]
    $region29: #{ei_dense_forward_prepared.1} parent=1 // pred_fallthru
      _
    // Predicated region
    $region30: #{ei_dense_forward_prepared.1} parent=1 // pred_check
      _
    $region31: #{ei_dense_forward_prepared.1} parent=1 // pred_check_branch
      %167 = sbr.rel (0) target = $region33
    $region32: #{ei_dense_forward_prepared.1} parent=1 // pred_region
      %168 = dma.done [#allocation5], 128
    $region33: #{ei_dense_forward_prepared.1} parent=1 // pred_fallthru
      _
    %169 = vsyncpa [#allocation4], 1
    %170 = vsyncpa [#allocation5], 1

</llo_original>
